<compile_context>
chip_gen: v7x
topology: tpu7x:2x2x1
jax: 0.10.0
libtpu: 0.0.40
codegen_flags: <defaults>
</compile_context>

<pallas_src>
import jax
import jax.numpy as jnp
from jax import lax
from jax.experimental import pallas as pl
from jax.experimental.pallas import tpu as pltpu


# ----------------------------------------------------------------------------
# Kernels
# ----------------------------------------------------------------------------
def _fused_kernel(a_ref, xw1_ref, w2bd_ref, out_ref):
    """Whole problem resident in VMEM (no grid => single-buffered, A read once).

    a_ref    : (N, N)     normalized adjacency (compute dtype)
    xw1_ref  : (N, T*H)   X @ (per-sample masked W1, lane-concatenated)
    w2bd_ref : (T*H, P)   per-sample masked W2 block-diagonal, lane-padded to P
    out_ref  : (N, P)     f32, Monte-Carlo samples folded into lanes
    """
    a = a_ref[...]
    h = jnp.maximum(
        jnp.dot(a, xw1_ref[...], preferred_element_type=jnp.float32), 0.0)
    hw = jnp.dot(h.astype(w2bd_ref.dtype), w2bd_ref[...],
                 preferred_element_type=jnp.float32)
    out_ref[...] = jnp.dot(a, hw.astype(a.dtype),
                           preferred_element_type=jnp.float32
                           ).astype(out_ref.dtype)


def _hidden_kernel(a_ref, xw1_ref, w2bd_ref, hw_ref):
    """Two-stage path, stage 1: hw_tile = relu(A_tile @ XW1) @ W2bd."""
    h = jnp.maximum(
        jnp.dot(a_ref[...], xw1_ref[...], preferred_element_type=jnp.float32),
        0.0)
    hw_ref[...] = jnp.dot(h.astype(w2bd_ref.dtype), w2bd_ref[...],
                          preferred_element_type=jnp.float32
                          ).astype(hw_ref.dtype)


def _propagate_kernel(a_ref, hw_ref, out_ref):
    """Two-stage path, stage 2: out_tile = A_tile @ hw (second propagation)."""
    out_ref[...] = jnp.dot(a_ref[...], hw_ref[...],
                           preferred_element_type=jnp.float32
                           ).astype(out_ref.dtype)


def _symmetric_onepass_kernel(a_ref, xw1_ref, w2bd_ref, out_ref):
    """Single A pass, valid only for symmetric A (undirected + symmetric norm):
         hw_k = relu(A[k,:] @ XW1) @ W2bd
         out += A[k,:]^T @ hw_k        (== A[:,k] @ hw_k since A == A^T)
    A is streamed from HBM exactly once; out is a resident f32 accumulator."""
    k = pl.program_id(0)

    @pl.when(k == 0)
    def _():
        out_ref[...] = jnp.zeros_like(out_ref)

    a_k = a_ref[...]
    h = jnp.maximum(
        jnp.dot(a_k, xw1_ref[...], preferred_element_type=jnp.float32), 0.0)
    hw = jnp.dot(h.astype(w2bd_ref.dtype), w2bd_ref[...],
                 preferred_element_type=jnp.float32)
    out_ref[...] += lax.dot_general(
        a_k, hw.astype(a_k.dtype),
        dimension_numbers=(((0,), (0,)), ((), ())),   # contract the row-tile dim
        preferred_element_type=jnp.float32)


# ----------------------------------------------------------------------------
# Wrapper helpers
# ----------------------------------------------------------------------------
def _round_up(v, m):
    return -(-v // m) * m


def _vmem_budget_bytes(fraction):
    """Generation-aware VMEM budget: capacity * fraction (v5e/v6e 128 MiB,
    v7x 64 MiB per TC). Falls back to the smallest (v7x) if the query fails."""
    cap = 64 << 20
    try:
        info = pltpu.get_tpu_info()
        cap = int(getattr(info, "vmem_capacity_bytes", cap)) or cap
    except Exception:
        pass
    return int(cap * fraction)


def _choose_row_tile(n, th, p, cd, budget, symmetric_a, slack=2 << 20):
    """Largest destination-row tile whose (double-buffered) working set fits."""
    cap_tile = _round_up(n, 8)
    for cand in (2048, 1024, 512, 256, 128, 64, 32, 16, 8):
        tm = min(cand, cap_tile)
        np_ = _round_up(n, tm)
        a_tile = 2 * tm * np_ * cd                       # A row block, 2 buffers
        if symmetric_a:
            need = (a_tile + 2 * np_ * th * cd + 2 * th * p * cd
                    + 2 * np_ * p * 4 + slack)           # + f32 accumulator
        else:
            s1 = a_tile + 2 * np_ * th * cd + 2 * th * p * cd + 2 * tm * p * cd
            s2 = a_tile + 2 * np_ * p * cd + 2 * tm * p * 4
            need = max(s1, s2) + slack
        if need <= budget:
            return tm
    return 8


# ----------------------------------------------------------------------------
# Forward wrapper
# ----------------------------------------------------------------------------
def bayesian_gnn_forward(a, x, w1, w2, mask1, mask2, *,
                         compute_dtype=jnp.bfloat16,
                         symmetric_a=False,
                         path=None,          # None/"auto" | "fused" | "tiled"
                         row_tile=None,      # manual row-tile override (tiled)
                         vmem_fraction=0.8):
    """a: (N,N) f32 normalized adjacency, x: (N,Fin), w1: (Fin,H), w2: (H,Fout),
    mask1: (T,Fin,H), mask2: (T,H,Fout).  Returns (T, N, Fout) f32 — the stacked
    per-Monte-Carlo-sample outputs of the PyTorch forward."""
    T, Fin, H = mask1.shape
    Fout = mask2.shape[-1]
    N = x.shape[0]
    TH = T * H
    TF = T * Fout
    P = _round_up(TF, 128)                 # lane-dense output width
    cd = jnp.dtype(compute_dtype).itemsize

    # --- prologue weight prep: O(T * weight size), independent of N ----------
    # Per-sample masked W1 concatenated along lanes: (Fin, T*H).
    w1cat = (w1[None, :, :] * mask1).transpose(1, 0, 2).reshape(Fin, TH)
    # Re-associated layer 1: XW1 = X @ W1cat (sample-invariant X used once),
    # so only the O(N^2) propagation touches A inside the kernels.
    xw1 = jnp.dot(x, w1cat)                                        # (N, T*H) f32
    # Per-sample masked W2, block-diagonal + lane-padded: (T*H, P).
    w2m = w2[None, :, :] * mask2                                   # (T, H, Fout)
    eye_t = jnp.eye(T, dtype=w2m.dtype)
    w2bd = (eye_t[:, None, :, None] * w2m[:, :, None, :]).reshape(TH, TF)
    w2bd = jnp.pad(w2bd, ((0, 0), (0, P - TF)))
    # TODO(synk): for T >~ 8 replace block-diagonal W2bd (O(T^2) weight bytes /
    # redundant MXU flops) with a per-sample batched dot_general.

    # TODO(synk): cache the cast/padded A across forward calls / training steps;
    # re-casting A each call adds an extra full HBM pass over the dominant input.
    a_c = a.astype(compute_dtype)
    xw1_c = xw1.astype(compute_dtype)
    w2bd_c = w2bd.astype(compute_dtype)
    # TODO(synk): stream A as fp8 (v7x) / int8+scale (v5e/v6e) to halve the
    # dominant HBM traffic; needs numerics re-validation.

    budget = _vmem_budget_bytes(vmem_fraction)
    slack = 2 << 20
    fused_need = (N * N + N * TH + TH * P) * cd + N * P * 4 + slack
    want = "auto" if path is None else path
    use_fused = (want == "fused") or (want == "auto" and fused_need <= budget)

    if use_fused:
        # No grid: every operand single-buffered in VMEM, A read from HBM once.
        out_flat = pl.pallas_call(
            _fused_kernel,
            out_shape=jax.ShapeDtypeStruct((N, P), jnp.float32),
            compiler_params=pltpu.CompilerParams(vmem_limit_bytes=budget),
        )(a_c, xw1_c, w2bd_c)
        return out_flat[:, :TF].reshape(N, T, Fout).transpose(1, 0, 2)

    # --- row-tiled paths (A does not fit in VMEM) -----------------------------
    if row_tile is None:
        tm = _choose_row_tile(N, TH, P, cd, budget, symmetric_a, slack)
    else:
        tm = max(8, _round_up(int(row_tile), 8))
    Np = _round_up(N, tm)
    n_tiles = Np // tm
    if Np != N:
        # Zero-pad: padded nodes neither send nor receive messages.
        a_c = jnp.pad(a_c, ((0, Np - N), (0, Np - N)))
        xw1_c = jnp.pad(xw1_c, ((0, Np - N), (0, 0)))

    if symmetric_a:
        # Single A pass with resident f32 accumulator (requires A == A^T).
        out_flat = pl.pallas_call(
            _symmetric_onepass_kernel,
            out_shape=jax.ShapeDtypeStruct((Np, P), jnp.float32),
            grid=(n_tiles,),
            in_specs=[
                pl.BlockSpec((tm, Np), lambda k: (k, 0)),   # A row block (streamed)
                pl.BlockSpec((Np, TH), lambda k: (0, 0)),   # XW1 (resident)
                pl.BlockSpec((TH, P), lambda k: (0, 0)),    # W2 block-diag (resident)
            ],
            out_specs=pl.BlockSpec((Np, P), lambda k: (0, 0)),  # f32 accumulator
            compiler_params=pltpu.CompilerParams(
                dimension_semantics=("arbitrary",),
                vmem_limit_bytes=budget),
        )(a_c, xw1_c, w2bd_c)
    else:
        # General (possibly asymmetric) A: two stages, A streamed twice.
        hw = pl.pallas_call(
            _hidden_kernel,
            out_shape=jax.ShapeDtypeStruct((Np, P), compute_dtype),
            grid=(n_tiles,),
            in_specs=[
                pl.BlockSpec((tm, Np), lambda i: (i, 0)),   # A row tile
                pl.BlockSpec((Np, TH), lambda i: (0, 0)),   # XW1 (resident)
                pl.BlockSpec((TH, P), lambda i: (0, 0)),    # W2 block-diag
            ],
            out_specs=pl.BlockSpec((tm, P), lambda i: (i, 0)),
            compiler_params=pltpu.CompilerParams(
                dimension_semantics=("parallel",),
                vmem_limit_bytes=budget),
        )(a_c, xw1_c, w2bd_c)
        out_flat = pl.pallas_call(
            _propagate_kernel,
            out_shape=jax.ShapeDtypeStruct((Np, P), jnp.float32),
            grid=(n_tiles,),
            in_specs=[
                pl.BlockSpec((tm, Np), lambda i: (i, 0)),   # A row tile
                pl.BlockSpec((Np, P), lambda i: (0, 0)),    # hw (resident)
            ],
            out_specs=pl.BlockSpec((tm, P), lambda i: (i, 0)),
            compiler_params=pltpu.CompilerParams(
                dimension_semantics=("parallel",),
                vmem_limit_bytes=budget),
        )(a_c, hw)

    return out_flat[:N, :TF].reshape(N, T, Fout).transpose(1, 0, 2)


# ----------------------------------------------------------------------------
# Input construction + pure-JAX reference
# ----------------------------------------------------------------------------
def xavier_uniform(key, fan_in, fan_out, gain):
    bound = gain * jnp.sqrt(6.0 / (fan_in + fan_out))
    return jax.random.uniform(key, (fan_in, fan_out), jnp.float32, -bound, bound)


def build_normalized_adjacency(key, n_nodes, edge_prob=0.25, symmetric=False):
    """Dense analogue of DGL u_mul_e/sum with edge_weight = d^-0.5 * d^-0.5."""
    adj = jax.random.bernoulli(key, edge_prob, (n_nodes, n_nodes)).astype(jnp.float32)
    if symmetric:
        adj = jnp.maximum(adj, adj.T)                      # undirected graph
    adj = jnp.minimum(adj + jnp.eye(n_nodes, dtype=jnp.float32), 1.0)  # self-loops
    deg = adj.sum(axis=1)
    dinv = jnp.power(deg, -0.5)
    return adj * dinv[:, None] * dinv[None, :]


def reference_forward(a, x, w1, w2, mask1, mask2):
    """Pure-JAX f32 reference matching the PyTorch forward (stacked over T)."""
    def one(m1, m2):
        res = a @ x
        h = jnp.maximum(res @ (w1 * m1), 0.0)
        return (a @ h) @ (w2 * m2)
    return jax.vmap(one)(mask1, mask2)


if __name__ == "__main__":
    # Small deterministic config consistent with the module's __init__.
    N = 32            # number of graph nodes
    in_feats = 16
    hid_feats = 32
    out_feats = 8
    T = 4             # Monte-Carlo samples
    theta = 0.1       # Bernoulli mask dropout probability

    key = jax.random.PRNGKey(0)
    k_adj, k_x, k_w1, k_w2, k_m1, k_m2, k_adj2, k_x2 = jax.random.split(key, 8)

    a = build_normalized_adjacency(k_adj, N)
    x = jax.random.normal(k_x, (N, in_feats), jnp.float32)

    gain = jnp.sqrt(2.0)  # calculate_gain('relu')
    w1 = xavier_uniform(k_w1, in_feats, hid_feats, gain)
    w2 = xavier_uniform(k_w2, hid_feats, out_feats, gain)

    mask1 = jax.random.bernoulli(k_m1, 1.0 - theta, (T, in_feats, hid_feats)).astype(jnp.float32)
    mask2 = jax.random.bernoulli(k_m2, 1.0 - theta, (T, hid_feats, out_feats)).astype(jnp.float32)

    ref = reference_forward(a, x, w1, w2, mask1, mask2)

    # 1) f32, auto dispatch -> fused single-A-pass path at this size.
    out_f32 = jax.block_until_ready(
        bayesian_gnn_forward(a, x, w1, w2, mask1, mask2, compute_dtype=jnp.float32))
    assert out_f32.shape == (T, N, out_feats)
    assert jnp.allclose(out_f32, ref, atol=1e-4, rtol=1e-4), "f32 fused mismatch"

    # 2) f32, forced two-stage row-tiled path (general / asymmetric A).
    out_two = jax.block_until_ready(
        bayesian_gnn_forward(a, x, w1, w2, mask1, mask2, compute_dtype=jnp.float32,
                             path="tiled", row_tile=8))
    assert jnp.allclose(out_two, ref, atol=1e-4, rtol=1e-4), "two-stage mismatch"

    # 3) f32, symmetric-A single-pass accumulation path; N=36 with row_tile=16
    #    also exercises the zero-padding of the ragged last tile.
    n_sym = 36
    a_sym = build_normalized_adjacency(k_adj2, n_sym, symmetric=True)
    x_sym = jax.random.normal(k_x2, (n_sym, in_feats), jnp.float32)
    ref_sym = reference_forward(a_sym, x_sym, w1, w2, mask1, mask2)
    out_sym = jax.block_until_ready(
        bayesian_gnn_forward(a_sym, x_sym, w1, w2, mask1, mask2,
                             compute_dtype=jnp.float32,
                             path="tiled", row_tile=16, symmetric_a=True))
    assert jnp.allclose(out_sym, ref_sym, atol=1e-4, rtol=1e-4), "symmetric one-pass mismatch"

    # 4) bf16 operands + f32 accumulation (default fast path): looser tolerance.
    out_bf16 = jax.block_until_ready(
        bayesian_gnn_forward(a, x, w1, w2, mask1, mask2, compute_dtype=jnp.bfloat16))
    assert jnp.allclose(out_bf16, ref, atol=5e-2, rtol=5e-2), "bf16 mismatch"

    print("KERNEL_OK")
</pallas_src>

<mosaic_0001>
module attributes {stable_mosaic.version = 11 : i64} {
  func.func @_fused_kernel(%arg0: memref<32x32xf32, #tpu.memory_space<vmem>>, %arg1: memref<32x128xf32, #tpu.memory_space<vmem>>, %arg2: memref<128x128xf32, #tpu.memory_space<vmem>>, %arg3: memref<32x128xf32, #tpu.memory_space<vmem>>) attributes {dimension_semantics = [], scalar_prefetch = 0 : i64, scratch_operands = 0 : i64, tpu.core_type = #tpu.core_type<tc>} {
    %c0 = arith.constant 0 : index
    %c0_0 = arith.constant 0 : index
    %0 = vector.load %arg0[%c0, %c0_0] : memref<32x32xf32, #tpu.memory_space<vmem>>, vector<32x32xf32>
    %c0_1 = arith.constant 0 : index
    %c0_2 = arith.constant 0 : index
    %1 = vector.load %arg1[%c0_1, %c0_2] : memref<32x128xf32, #tpu.memory_space<vmem>>, vector<32x128xf32>
    %cst = arith.constant dense<0.000000e+00> : vector<32x128xf32>
    %2 = tpu.matmul %0, %1, %cst {dimension_numbers = #tpu.dot_dimension_numbers<[1], [0], [0], [1], [0, 0, 1, 1], [], []>} : vector<32x32xf32>, vector<32x128xf32>, vector<32x128xf32> -> vector<32x128xf32>
    %cst_3 = arith.constant 0.000000e+00 : f32
    %3 = vector.broadcast %cst_3 : f32 to vector<32x128xf32>
    %4 = arith.maximumf %2, %3 : vector<32x128xf32>
    %c0_4 = arith.constant 0 : index
    %c0_5 = arith.constant 0 : index
    %5 = vector.load %arg2[%c0_4, %c0_5] : memref<128x128xf32, #tpu.memory_space<vmem>>, vector<128x128xf32>
    %cst_6 = arith.constant dense<0.000000e+00> : vector<32x128xf32>
    %6 = tpu.matmul %4, %5, %cst_6 {dimension_numbers = #tpu.dot_dimension_numbers<[1], [0], [0], [1], [0, 0, 1, 1], [], []>} : vector<32x128xf32>, vector<128x128xf32>, vector<32x128xf32> -> vector<32x128xf32>
    %cst_7 = arith.constant dense<0.000000e+00> : vector<32x128xf32>
    %7 = tpu.matmul %0, %6, %cst_7 {dimension_numbers = #tpu.dot_dimension_numbers<[1], [0], [0], [1], [0, 0, 1, 1], [], []>} : vector<32x32xf32>, vector<32x128xf32>, vector<32x128xf32> -> vector<32x128xf32>
    %c0_8 = arith.constant 0 : index
    %c0_9 = arith.constant 0 : index
    %8 = vector.load %arg3[%c0_8, %c0_9] : memref<32x128xf32, #tpu.memory_space<vmem>>, vector<32x128xf32>
    tpu.vector_store %arg3[%c0_8, %c0_9], %7 {strides = array<i32>} : memref<32x128xf32, #tpu.memory_space<vmem>>, vector<32x128xf32>,
    return
  }
}

</mosaic_0001>

<llo_original>
// kernel: tpu_custom_call.1
$region0: #{tpu_custom_call.1}
  #allocation0 [shape = 'u32[]', space=smem, size = 0x4, offset = 0x4, fixed_abs, tag = 'smem constant byte address 0x4 - core index']
  #allocation1 [shape = 'u32[144,128]{1,0:T(1,128)}', space=vmem, size = 0x12000, scoped, tag = 'internal scratch']
  %s0 = inlined_call_operand.hbm [shape: f32[32,32], index: 0, kind: input, shape index: {}]
  %s1 = inlined_call_operand.hbm [shape: f32[32,128], index: 1, kind: input, shape index: {}]
  %s2 = inlined_call_operand.hbm [shape: f32[128,128], index: 2, kind: input, shape index: {}]
  %s3 = inlined_call_operand.hbm [shape: f32[32,128], index: 3, kind: output, shape index: {}]
  %s4 = sld [smem:[#allocation0]]
  $region34: #{tpu_custom_call.1} parent=0
    _
  %s6 = ssub.s32 1, %s4
  %s7 = scalar_select 0, %s6, %s4
  $region1: #{tpu_custom_call.1} parent=0
    #allocation2 [shape = 'u8[16384]{0}', space=vmem, size = 0x4000, scoped, tag = 'input window, operand 0, single buffered']
    #allocation3 [shape = 's32[1]{0}', space=sflag, size = 0x4, scoped, tag = 'scoped memory for tpu_custom_call.1']
    #allocation4 [shape = 's32[1]{0}', space=sflag, size = 0x4, scoped, tag = 'scoped memory for tpu_custom_call.1']
    #allocation5 [shape = 'u8[16384]{0}', space=vmem, size = 0x4000, scoped, tag = 'input window, operand 1, single buffered']
    #allocation6 [shape = 's32[1]{0}', space=sflag, size = 0x4, scoped, tag = 'scoped memory for tpu_custom_call.1']
    #allocation7 [shape = 'u8[65536]{0}', space=vmem, size = 0x10000, scoped, tag = 'input window, operand 2, single buffered']
    #allocation8 [shape = 'u8[16384]{0}', space=vmem, size = 0x4000, scoped, tag = 'output window, operand 0, single buffered']
    %8 = vsyncpa [#allocation3], 0
    %9 = vsyncpa [#allocation6], 0
    %10 = vsyncpa [#allocation4], 0
    // Predicated region
    $region2: #{tpu_custom_call.1} parent=1 // pred_check
      _
    $region3: #{tpu_custom_call.1} parent=1 // pred_check_branch
      %12 = sbr.rel (0) target = $region5
    $region4: #{tpu_custom_call.1} parent=1 // pred_region
      %s14 = ssub.s32 512, 512
      %15 = vsyncadd [#allocation3], %s14
      %s16 = sshll.u32 [#allocation2], 4
      %s17 = int_to_ptr.vmem [resolvable:$true] %s16
      %22 = dma.hbm_to_vmem [thread:$0]  %s0, 512, %s17, [#allocation3], 128, 128, 8
    $region5: #{tpu_custom_call.1} parent=1 // pred_fallthru
      _
    // Predicated region
    $region6: #{tpu_custom_call.1} parent=1 // pred_check
      _
    $region7: #{tpu_custom_call.1} parent=1 // pred_check_branch
      %24 = sbr.rel (0) target = $region9
    $region8: #{tpu_custom_call.1} parent=1 // pred_region
      %s26 = ssub.s32 512, 512
      %27 = vsyncadd [#allocation6], %s26
      %s28 = sshll.u32 [#allocation5], 4
      %s29 = int_to_ptr.vmem [resolvable:$true] %s28
      %34 = dma.hbm_to_vmem [thread:$0]  %s1, 512, %s29, [#allocation6], 128, 128, 8
    $region9: #{tpu_custom_call.1} parent=1 // pred_fallthru
      _
    // Predicated region
    $region10: #{tpu_custom_call.1} parent=1 // pred_check
      _
    $region11: #{tpu_custom_call.1} parent=1 // pred_check_branch
      %36 = sbr.rel (0) target = $region13
    $region12: #{tpu_custom_call.1} parent=1 // pred_region
      %s38 = ssub.s32 2048, 2048
      %39 = vsyncadd [#allocation6], %s38
      %s40 = sshll.u32 [#allocation7], 4
      %s41 = int_to_ptr.vmem [resolvable:$true] %s40
      %46 = dma.hbm_to_vmem [thread:$0]  %s2, 2048, %s41, [#allocation6], 128, 128, 8
    $region13: #{tpu_custom_call.1} parent=1 // pred_fallthru
      _
    // Predicated region
    $region14: #{tpu_custom_call.1} parent=1 // pred_check
      _
    $region15: #{tpu_custom_call.1} parent=1 // pred_check_branch
      %48 = sbr.rel (0) target = $region17
    $region16: #{tpu_custom_call.1} parent=1 // pred_region
      %49 = dma.done [#allocation3], 512
    $region17: #{tpu_custom_call.1} parent=1 // pred_fallthru
      _
    // Predicated region
    $region18: #{tpu_custom_call.1} parent=1 // pred_check
      _
    $region19: #{tpu_custom_call.1} parent=1 // pred_check_branch
      %51 = sbr.rel (0) target = $region21
    $region20: #{tpu_custom_call.1} parent=1 // pred_region
      %52 = dma.done [#allocation6], 512
    $region21: #{tpu_custom_call.1} parent=1 // pred_fallthru
      _
    // Predicated region
    $region22: #{tpu_custom_call.1} parent=1 // pred_check
      _
    $region23: #{tpu_custom_call.1} parent=1 // pred_check_branch
      %54 = sbr.rel (0) target = $region25
    $region24: #{tpu_custom_call.1} parent=1 // pred_region
      %55 = dma.done [#allocation6], 2048
    $region25: #{tpu_custom_call.1} parent=1 // pred_fallthru
      _
    %v56 = vld [vmem:[#allocation2] sm:$0xff]
    %v57 = vld [vmem:[#allocation2 + $0x8] sm:$0xff]
    %v58 = vld [vmem:[#allocation2 + $0x10] sm:$0xff]
    %v59 = vld [vmem:[#allocation2 + $0x18] sm:$0xff]
    %v60 = vld [vmem:[#allocation5] sm:$0xff]
    %v61 = vld [vmem:[#allocation5 + $0x8] sm:$0xff]
    %v62 = vld [vmem:[#allocation5 + $0x10] sm:$0xff]
    %v63 = vld [vmem:[#allocation5 + $0x18] sm:$0xff]
    %vm64 = vcmask 261120
    %v66 = vsel %vm64, %v56, 0
    %v69 = vsel %vm64, %v57, 0
    %v72 = vsel %vm64, %v58, 0
    %v75 = vsel %vm64, %v59, 0
    %77 = vmatprep.subr.mxu0 0.0
    %78 = vmatpush1.msra.mxu0 %v60
    %79 = vmatprep.subr.mxu0 0.0
    %80 = vmatpush1.msra.mxu0 %v61
    %81 = vmatprep.subr.mxu0 0.0
    %82 = vmatpush1.msra.mxu0 %v62
    %83 = vmatprep.subr.mxu0 0.0
    %84 = vmatpush1.msra.mxu0 %v63
    %85 = vmatprep.subr.mxu0 0.0
    %86 = vmatpush1.msra.mxu0 0.0
    %87 = vmatprep.subr.mxu0 0.0
    %88 = vmatpush1.msra.mxu0 0.0
    %89 = vmatprep.subr.mxu0 0.0
    %90 = vmatpush1.msra.mxu0 0.0
    %91 = vmatprep.subr.mxu0 0.0
    %92 = vmatpush1.msra.mxu0 0.0
    %93 = vmatprep.subr.mxu0 0.0
    %94 = vmatpush1.msra.mxu0 0.0
    %95 = vmatprep.subr.mxu0 0.0
    %96 = vmatpush1.msra.mxu0 0.0
    %97 = vmatprep.subr.mxu0 0.0
    %98 = vmatpush1.msra.mxu0 0.0
    %99 = vmatprep.subr.mxu0 0.0
    %100 = vmatpush1.msra.mxu0 0.0
    %101 = vmatprep.subr.mxu0 0.0
    %102 = vmatpush1.msra.mxu0 0.0
    %103 = vmatprep.subr.mxu0 0.0
    %104 = vmatpush1.msra.mxu0 0.0
    %105 = vmatprep.subr.mxu0 0.0
    %106 = vmatpush1.msra.mxu0 0.0
    %107 = vmatprep.subr.mxu0 0.0
    %108 = vmatpush1.msra.mxu0 0.0
    %109 = vmatprep.subr.mxu0 0.0
    %110 = vmatpush1.msra.mxu0 0.0
    %111 = vmatprep.subr.mxu0 0.0
    %112 = vmatpush1.msra.mxu0 0.0
    %113 = vmatprep.subr.mxu0 0.0
    %114 = vmatpush1.msra.mxu0 0.0
    %115 = vmatprep.subr.mxu0 0.0
    %116 = vmatpush1.msra.mxu0 0.0
    %117 = vmatprep.subr.mxu0 0.0
    %118 = vmatpush1.msra.mxu0 0.0
    %119 = vmatprep.subr.mxu0 0.0
    %120 = vmatpush1.msra.mxu0 0.0
    %121 = vmatprep.subr.mxu0 0.0
    %122 = vmatpush1.msra.mxu0 0.0
    %123 = vmatprep.subr.mxu0 0.0
    %124 = vmatpush1.msra.mxu0 0.0
    %125 = vmatprep.subr.mxu0 0.0
    %126 = vmatpush1.msra.mxu0 0.0
    %127 = vmatprep.subr.mxu0 0.0
    %128 = vmatpush1.msra.mxu0 0.0
    %129 = vmatprep.subr.mxu0 0.0
    %130 = vmatpush1.msra.mxu0 0.0
    %131 = vmatprep.subr.mxu0 0.0
    %132 = vmatpush1.msra.mxu0 0.0
    %133 = vmatprep.subr.mxu0 0.0
    %134 = vmatpush1.msra.mxu0 0.0
    %135 = vmatprep.subr.mxu0 0.0
    %136 = vmatpush1.msra.mxu0 0.0
    %137 = vmatprep.subr.mxu0 0.0
    %138 = vmatpush1.msra.mxu0 0.0
    %139 = vmatprep.subr.mxu0 0.0
    %140 = vmatpush1.msra.mxu0 0.0
    %141 = vmatprep.mubr.f32.mxu0 0.0
    %142 = vmatmul.mubr.f32.gmra.mrb[0].mxu0 %v66
    %v143 = vpop.f32.mrb[0].mxu0
    %v144 = vadd.f32 0.0, %v143
    %v145 = vpop.f32.mrb[0].mxu0
    %146 = vmatprep.mubr.f32.mxu0 0.0
    %147 = vmatmul.mubr.f32.gmra.mrb[0].mxu0 %v69
    %v148 = vpop.f32.mrb[0].mxu0
    %v149 = vadd.f32 0.0, %v148
    %v150 = vpop.f32.mrb[0].mxu0
    %151 = vmatprep.mubr.f32.mxu0 0.0
    %152 = vmatmul.mubr.f32.gmra.mrb[0].mxu0 %v72
    %v153 = vpop.f32.mrb[0].mxu0
    %v154 = vadd.f32 0.0, %v153
    %v155 = vpop.f32.mrb[0].mxu0
    %156 = vmatprep.mubr.f32.mxu0 0.0
    %157 = vmatmul.mubr.f32.gmra.mrb[0].mxu0 %v75
    %v158 = vpop.f32.mrb[0].mxu0
    %v159 = vadd.f32 0.0, %v158
    %v160 = vpop.f32.mrb[0].mxu0
    %161 = vdwg.mxu0
    %v162 = vmax.f32 %v144, 0.0
    %v163 = vmax.f32 %v149, 0.0
    %v164 = vmax.f32 %v154, 0.0
    %v165 = vmax.f32 %v159, 0.0
    %v166 = vld [vmem:[#allocation7] sm:$0xff]
    %v167 = vld [vmem:[#allocation7 + $0x8] sm:$0xff]
    %v168 = vld [vmem:[#allocation7 + $0x10] sm:$0xff]
    %v169 = vld [vmem:[#allocation7 + $0x18] sm:$0xff]
    %v170 = vld [vmem:[#allocation7 + $0x20] sm:$0xff]
    %v171 = vld [vmem:[#allocation7 + $0x28] sm:$0xff]
    %v172 = vld [vmem:[#allocation7 + $0x30] sm:$0xff]
    %v173 = vld [vmem:[#allocation7 + $0x38] sm:$0xff]
    %v174 = vld [vmem:[#allocation7 + $0x40] sm:$0xff]
    %v175 = vld [vmem:[#allocation7 + $0x48] sm:$0xff]
    %v176 = vld [vmem:[#allocation7 + $0x50] sm:$0xff]
    %v177 = vld [vmem:[#allocation7 + $0x58] sm:$0xff]
    %v178 = vld [vmem:[#allocation7 + $0x60] sm:$0xff]
    %v179 = vld [vmem:[#allocation7 + $0x68] sm:$0xff]
    %v180 = vld [vmem:[#allocation7 + $0x70] sm:$0xff]
    %v181 = vld [vmem:[#allocation7 + $0x78] sm:$0xff]
    %182 = vmatprep.subr.mxu0 0.0
    %183 = vmatpush1.msra.mxu0 %v166
    %184 = vmatprep.subr.mxu0 0.0
    %185 = vmatpush1.msra.mxu0 %v167
    %186 = vmatprep.subr.mxu0 0.0
    %187 = vmatpush1.msra.mxu0 %v168
    %188 = vmatprep.subr.mxu0 0.0
    %189 = vmatpush1.msra.mxu0 %v169
    %190 = vmatprep.subr.mxu0 0.0
    %191 = vmatpush1.msra.mxu0 %v170
    %192 = vmatprep.subr.mxu0 0.0
    %193 = vmatpush1.msra.mxu0 %v171
    %194 = vmatprep.subr.mxu0 0.0
    %195 = vmatpush1.msra.mxu0 %v172
    %196 = vmatprep.subr.mxu0 0.0
    %197 = vmatpush1.msra.mxu0 %v173
    %198 = vmatprep.subr.mxu0 0.0
    %199 = vmatpush1.msra.mxu0 %v174
    %200 = vmatprep.subr.mxu0 0.0
    %201 = vmatpush1.msra.mxu0 %v175
    %202 = vmatprep.subr.mxu0 0.0
    %203 = vmatpush1.msra.mxu0 %v176
    %204 = vmatprep.subr.mxu0 0.0
    %205 = vmatpush1.msra.mxu0 %v177
    %206 = vmatprep.subr.mxu0 0.0
    %207 = vmatpush1.msra.mxu0 %v178
    %208 = vmatprep.subr.mxu0 0.0
    %209 = vmatpush1.msra.mxu0 %v179
    %210 = vmatprep.subr.mxu0 0.0
    %211 = vmatpush1.msra.mxu0 %v180
    %212 = vmatprep.subr.mxu0 0.0
    %213 = vmatpush1.msra.mxu0 %v181
    %214 = vmatprep.subr.mxu0 0.0
    %215 = vmatpush1.msra.mxu0 0.0
    %216 = vmatprep.subr.mxu0 0.0
    %217 = vmatpush1.msra.mxu0 0.0
    %218 = vmatprep.subr.mxu0 0.0
    %219 = vmatpush1.msra.mxu0 0.0
    %220 = vmatprep.subr.mxu0 0.0
    %221 = vmatpush1.msra.mxu0 0.0
    %222 = vmatprep.subr.mxu0 0.0
    %223 = vmatpush1.msra.mxu0 0.0
    %224 = vmatprep.subr.mxu0 0.0
    %225 = vmatpush1.msra.mxu0 0.0
    %226 = vmatprep.subr.mxu0 0.0
    %227 = vmatpush1.msra.mxu0 0.0
    %228 = vmatprep.subr.mxu0 0.0
    %229 = vmatpush1.msra.mxu0 0.0
    %230 = vmatprep.subr.mxu0 0.0
    %231 = vmatpush1.msra.mxu0 0.0
    %232 = vmatprep.subr.mxu0 0.0
    %233 = vmatpush1.msra.mxu0 0.0
    %234 = vmatprep.subr.mxu0 0.0
    %235 = vmatpush1.msra.mxu0 0.0
    %236 = vmatprep.subr.mxu0 0.0
    %237 = vmatpush1.msra.mxu0 0.0
    %238 = vmatprep.subr.mxu0 0.0
    %239 = vmatpush1.msra.mxu0 0.0
    %240 = vmatprep.subr.mxu0 0.0
    %241 = vmatpush1.msra.mxu0 0.0
    %242 = vmatprep.subr.mxu0 0.0
    %243 = vmatpush1.msra.mxu0 0.0
    %244 = vmatprep.subr.mxu0 0.0
    %245 = vmatpush1.msra.mxu0 0.0
    %246 = vmatprep.mubr.f32.mxu0 0.0
    %247 = vmatmul.mubr.f32.gmra.mrb[0].mxu0 %v162
    %v248 = vpop.f32.mrb[0].mxu0
    %v249 = vadd.f32 0.0, %v248
    %v250 = vpop.f32.mrb[0].mxu0
    %251 = vmatprep.mubr.f32.mxu0 0.0
    %252 = vmatmul.mubr.f32.gmra.mrb[0].mxu0 %v163
    %v253 = vpop.f32.mrb[0].mxu0
    %v254 = vadd.f32 0.0, %v253
    %v255 = vpop.f32.mrb[0].mxu0
    %256 = vmatprep.mubr.f32.mxu0 0.0
    %257 = vmatmul.mubr.f32.gmra.mrb[0].mxu0 %v164
    %v258 = vpop.f32.mrb[0].mxu0
    %v259 = vadd.f32 0.0, %v258
    %v260 = vpop.f32.mrb[0].mxu0
    %261 = vmatprep.mubr.f32.mxu0 0.0
    %262 = vmatmul.mubr.f32.gmra.mrb[0].mxu0 %v165
    %v263 = vpop.f32.mrb[0].mxu0
    %v264 = vadd.f32 0.0, %v263
    %v265 = vpop.f32.mrb[0].mxu0
    %266 = vdwg.mxu0
    %267 = vmatprep.subr.mxu0 0.0
    %268 = vmatpush1.msra.mxu0 %v249
    %269 = vmatprep.subr.mxu0 0.0
    %270 = vmatpush1.msra.mxu0 %v254
    %271 = vmatprep.subr.mxu0 0.0
    %272 = vmatpush1.msra.mxu0 %v259
    %273 = vmatprep.subr.mxu0 0.0
    %274 = vmatpush1.msra.mxu0 %v264
    %275 = vmatprep.subr.mxu0 0.0
    %276 = vmatpush1.msra.mxu0 0.0
    %277 = vmatprep.subr.mxu0 0.0
    %278 = vmatpush1.msra.mxu0 0.0
    %279 = vmatprep.subr.mxu0 0.0
    %280 = vmatpush1.msra.mxu0 0.0
    %281 = vmatprep.subr.mxu0 0.0
    %282 = vmatpush1.msra.mxu0 0.0
    %283 = vmatprep.subr.mxu0 0.0
    %284 = vmatpush1.msra.mxu0 0.0
    %285 = vmatprep.subr.mxu0 0.0
    %286 = vmatpush1.msra.mxu0 0.0
    %287 = vmatprep.subr.mxu0 0.0
    %288 = vmatpush1.msra.mxu0 0.0
    %289 = vmatprep.subr.mxu0 0.0
    %290 = vmatpush1.msra.mxu0 0.0
    %291 = vmatprep.subr.mxu0 0.0
    %292 = vmatpush1.msra.mxu0 0.0
    %293 = vmatprep.subr.mxu0 0.0
    %294 = vmatpush1.msra.mxu0 0.0
    %295 = vmatprep.subr.mxu0 0.0
    %296 = vmatpush1.msra.mxu0 0.0
    %297 = vmatprep.subr.mxu0 0.0
    %298 = vmatpush1.msra.mxu0 0.0
    %299 = vmatprep.subr.mxu0 0.0
    %300 = vmatpush1.msra.mxu0 0.0
    %301 = vmatprep.subr.mxu0 0.0
    %302 = vmatpush1.msra.mxu0 0.0
    %303 = vmatprep.subr.mxu0 0.0
    %304 = vmatpush1.msra.mxu0 0.0
    %305 = vmatprep.subr.mxu0 0.0
    %306 = vmatpush1.msra.mxu0 0.0
    %307 = vmatprep.subr.mxu0 0.0
    %308 = vmatpush1.msra.mxu0 0.0
    %309 = vmatprep.subr.mxu0 0.0
    %310 = vmatpush1.msra.mxu0 0.0
    %311 = vmatprep.subr.mxu0 0.0
    %312 = vmatpush1.msra.mxu0 0.0
    %313 = vmatprep.subr.mxu0 0.0
    %314 = vmatpush1.msra.mxu0 0.0
    %315 = vmatprep.subr.mxu0 0.0
    %316 = vmatpush1.msra.mxu0 0.0
    %317 = vmatprep.subr.mxu0 0.0
    %318 = vmatpush1.msra.mxu0 0.0
    %319 = vmatprep.subr.mxu0 0.0
    %320 = vmatpush1.msra.mxu0 0.0
    %321 = vmatprep.subr.mxu0 0.0
    %322 = vmatpush1.msra.mxu0 0.0
    %323 = vmatprep.subr.mxu0 0.0
    %324 = vmatpush1.msra.mxu0 0.0
    %325 = vmatprep.subr.mxu0 0.0
    %326 = vmatpush1.msra.mxu0 0.0
    %327 = vmatprep.subr.mxu0 0.0
    %328 = vmatpush1.msra.mxu0 0.0
    %329 = vmatprep.subr.mxu0 0.0
    %330 = vmatpush1.msra.mxu0 0.0
    %331 = vmatprep.mubr.f32.mxu0 0.0
    %332 = vmatmul.mubr.f32.gmra.mrb[0].mxu0 %v66
    %v333 = vpop.f32.mrb[0].mxu0
    %v334 = vadd.f32 0.0, %v333
    %v335 = vpop.f32.mrb[0].mxu0
    %336 = vmatprep.mubr.f32.mxu0 0.0
    %337 = vmatmul.mubr.f32.gmra.mrb[0].mxu0 %v69
    %v338 = vpop.f32.mrb[0].mxu0
    %v339 = vadd.f32 0.0, %v338
    %v340 = vpop.f32.mrb[0].mxu0
    %341 = vmatprep.mubr.f32.mxu0 0.0
    %342 = vmatmul.mubr.f32.gmra.mrb[0].mxu0 %v72
    %v343 = vpop.f32.mrb[0].mxu0
    %v344 = vadd.f32 0.0, %v343
    %v345 = vpop.f32.mrb[0].mxu0
    %346 = vmatprep.mubr.f32.mxu0 0.0
    %347 = vmatmul.mubr.f32.gmra.mrb[0].mxu0 %v75
    %v348 = vpop.f32.mrb[0].mxu0
    %v349 = vadd.f32 0.0, %v348
    %v350 = vpop.f32.mrb[0].mxu0
    %351 = vdwg.mxu0
    %352 = vst [vmem:[#allocation8] sm:$0xff] %v334
    %353 = vst [vmem:[#allocation8 + $0x8] sm:$0xff] %v339
    %354 = vst [vmem:[#allocation8 + $0x10] sm:$0xff] %v344
    %355 = vst [vmem:[#allocation8 + $0x18] sm:$0xff] %v349
    // Predicated region
    $region26: #{tpu_custom_call.1} parent=1 // pred_check
      _
    $region27: #{tpu_custom_call.1} parent=1 // pred_check_branch
      %357 = sbr.rel (0) target = $region29
    $region28: #{tpu_custom_call.1} parent=1 // pred_region
      %s359 = ssub.s32 512, 512
      %360 = vsyncadd [#allocation4], %s359
      %s361 = sshll.u32 [#allocation8], 4
      %s362 = int_to_ptr.vmem [resolvable:$true] %s361
      %367 = dma.vmem_to_hbm [thread:$0]  %s362, 512, %s3, [#allocation4], 128, 128, 8
    $region29: #{tpu_custom_call.1} parent=1 // pred_fallthru
      _
    // Predicated region
    $region30: #{tpu_custom_call.1} parent=1 // pred_check
      _
    $region31: #{tpu_custom_call.1} parent=1 // pred_check_branch
      %369 = sbr.rel (0) target = $region33
    $region32: #{tpu_custom_call.1} parent=1 // pred_region
      %370 = dma.done [#allocation4], 512
    $region33: #{tpu_custom_call.1} parent=1 // pred_fallthru
      _
    %371 = vsyncpa [#allocation3], 1
    %372 = vsyncpa [#allocation6], 1
    %373 = vsyncpa [#allocation4], 1

</llo_original>
